<compile_context>
chip_gen: v6e
topology: v6e:2x2x1
jax: 0.10.0
libtpu: 0.0.40
codegen_flags: <defaults>
</compile_context>

<pallas_src>
import functools
import math

import jax
import jax.numpy as jnp
from jax.experimental import pallas as pl
from jax.experimental.pallas import tpu as pltpu


# ---------------------------------------------------------------------------
# Feed-forward block kernel:  y = relu(x @ W1 + b1) @ W2 + b2
# grid = (row tiles, d_ff tiles); d_ff is the reduction axis (last, arbitrary).
# ---------------------------------------------------------------------------
def _ffn_kernel(x_ref, w1_ref, b1_ref, w2_ref, b2_ref, o_ref, acc_ref):
    k = pl.program_id(1)

    @pl.when(k == 0)
    def _init():
        # Fold the second bias into the accumulator init (saves a VPU pass
        # over the (tile_m, d_model) output tile at the last step).
        acc_ref[...] = jnp.broadcast_to(
            b2_ref[...].astype(jnp.float32), acc_ref.shape)

    # First matmul over this d_ff slice (MXU, f32 accumulate) + bias + ReLU.
    h = jnp.dot(x_ref[...], w1_ref[...], preferred_element_type=jnp.float32)
    h = jnp.maximum(h + b1_ref[...].astype(jnp.float32), 0.0)
    # Dropout is identity in eval mode.
    # TODO(synk): add pltpu.prng_random_bits-based mask for training mode.

    # Second matmul: accumulate this d_ff slice's contribution to the output.
    acc_ref[...] += jnp.dot(h.astype(w2_ref.dtype), w2_ref[...],
                            preferred_element_type=jnp.float32)

    @pl.when(k == pl.num_programs(1) - 1)
    def _store():
        o_ref[...] = acc_ref[...].astype(o_ref.dtype)


def _choose_tile(total, preferred, align):
    """Largest multiple of `align` <= `preferred` that divides `total`,
    falling back to the full extent (always a legal block)."""
    if total <= preferred:
        return total
    t = (preferred // align) * align
    while t >= align:
        if total % t == 0:
            return t
        t -= align
    return total


def feed_forward_block(x, w1, b1, w2, b2, *, tile_m=None, tk_ff=None,
                       compute_dtype=jnp.bfloat16):
    """x: (batch, seq, d_model) -> (batch, seq, d_model).

    Weights are stored as (in_features, out_features), i.e. the transpose of
    torch.nn.Linear's layout, so the kernel computes plain x @ W + b.
    """
    batch, seq, d_model = x.shape
    d_ff = w1.shape[1]
    M = batch * seq
    out_dtype = x.dtype

    # bf16 operands -> MXU-native rate and halved HBM weight traffic;
    # biases and the accumulator stay f32.
    xc = x.reshape(M, d_model).astype(compute_dtype)
    w1c = w1.astype(compute_dtype)
    w2c = w2.astype(compute_dtype)
    b1_2d = b1.reshape(1, d_ff).astype(jnp.float32)
    b2_2d = b2.reshape(1, d_model).astype(jnp.float32)

    dtype_bytes = jnp.dtype(compute_dtype).itemsize
    if tile_m is None:
        tile_m = _choose_tile(M, 1024 if dtype_bytes == 2 else 512, 16)
    if tk_ff is None:
        tk_ff = _choose_tile(d_ff, 512, 128)
    assert M % tile_m == 0 and d_ff % tk_ff == 0
    assert tk_ff == d_ff or tk_ff % 128 == 0

    # Explicit VMEM budget: double-buffered pipelined operands + accumulator.
    need = (2 * (2 * tile_m * d_model * dtype_bytes        # x tile + out tile
                 + d_model * tk_ff * dtype_bytes           # W1 tile
                 + tk_ff * d_model * dtype_bytes           # W2 tile
                 + (tk_ff + d_model) * 4)                  # biases (f32)
            + tile_m * d_model * 4)                        # f32 accumulator
    vmem_limit = min(max(2 * need + (4 << 20), 32 << 20), 64 << 20)

    cost = pl.CostEstimate(
        flops=4 * M * d_model * d_ff,
        transcendentals=0,
        bytes_accessed=(2 * M * d_model * dtype_bytes
                        + 2 * d_model * d_ff * dtype_bytes
                        + (d_ff + d_model) * 4),
    )

    out2d = pl.pallas_call(
        _ffn_kernel,
        out_shape=jax.ShapeDtypeStruct((M, d_model), out_dtype),
        grid_spec=pltpu.PrefetchScalarGridSpec(
            num_scalar_prefetch=0,
            grid=(M // tile_m, d_ff // tk_ff),
            in_specs=[
                pl.BlockSpec((tile_m, d_model), lambda i, k: (i, 0)),  # x
                pl.BlockSpec((d_model, tk_ff), lambda i, k: (0, k)),   # W1
                pl.BlockSpec((1, tk_ff), lambda i, k: (0, k)),         # b1
                pl.BlockSpec((tk_ff, d_model), lambda i, k: (k, 0)),   # W2
                pl.BlockSpec((1, d_model), lambda i, k: (0, 0)),       # b2
            ],
            out_specs=pl.BlockSpec((tile_m, d_model), lambda i, k: (i, 0)),
            scratch_shapes=[pltpu.VMEM((tile_m, d_model), jnp.float32)],
        ),
        compiler_params=pltpu.CompilerParams(
            dimension_semantics=("parallel", "arbitrary"),
            vmem_limit_bytes=vmem_limit),
        cost_estimate=cost,
    )(xc, w1c, b1_2d, w2c, b2_2d)

    return out2d.reshape(batch, seq, d_model)


# ---------------------------------------------------------------------------
# LayerNormalization kernel (the Decoder's final norm):
#   y = alpha * (x - mean) / (std + eps) + bias,  std unbiased (torch default),
#   alpha / bias are scalar parameters.
# ---------------------------------------------------------------------------
def _layernorm_kernel(x_ref, a_ref, b_ref, o_ref, *, eps):
    x = x_ref[...].astype(jnp.float32)
    d = x.shape[-1]
    mean = jnp.mean(x, axis=-1, keepdims=True)
    xm = x - mean
    # torch.Tensor.std uses Bessel's correction (divide by d - 1).
    std = jnp.sqrt(jnp.sum(xm * xm, axis=-1, keepdims=True) / (d - 1))
    y = a_ref[...] * xm / (std + eps) + b_ref[...]
    o_ref[...] = y.astype(o_ref.dtype)


def layer_normalization(x, alpha, bias, *, eps=1e-6, tile_m=None):
    batch, seq, d_model = x.shape
    M = batch * seq
    x2d = x.reshape(M, d_model)
    if tile_m is None:
        tile_m = _choose_tile(M, 512, 8)
    assert M % tile_m == 0
    a2d = alpha.reshape(1, 1).astype(jnp.float32)
    b2d = bias.reshape(1, 1).astype(jnp.float32)

    out2d = pl.pallas_call(
        functools.partial(_layernorm_kernel, eps=eps),
        out_shape=jax.ShapeDtypeStruct((M, d_model), x.dtype),
        grid_spec=pltpu.PrefetchScalarGridSpec(
            num_scalar_prefetch=0,
            grid=(M // tile_m,),
            in_specs=[
                pl.BlockSpec((tile_m, d_model), lambda i: (i, 0)),
                pl.BlockSpec((1, 1), lambda i: (0, 0)),
                pl.BlockSpec((1, 1), lambda i: (0, 0)),
            ],
            out_specs=pl.BlockSpec((tile_m, d_model), lambda i: (i, 0)),
        ),
        compiler_params=pltpu.CompilerParams(
            dimension_semantics=("parallel",)),
    )(x2d, a2d, b2d)
    return out2d.reshape(batch, seq, d_model)


# ---------------------------------------------------------------------------
# Decoder forward: run the layers, then the final LayerNormalization.
# ---------------------------------------------------------------------------
def decoder_forward(x, encoder_output, src_msk, tgt_msk, layer_params,
                    norm_alpha, norm_bias, *, eps=1e-6,
                    ffn_tile_m=None, ffn_tk_ff=None):
    # TODO(synk): DecoderBlock internals (self-/cross-attention, residuals,
    # mask usage) are not in the provided spec; each layer is the eval-mode
    # feed-forward block kernel and encoder_output / masks are unused.
    del encoder_output, src_msk, tgt_msk
    for (w1, b1, w2, b2) in layer_params:
        x = feed_forward_block(x, w1, b1, w2, b2,
                               tile_m=ffn_tile_m, tk_ff=ffn_tk_ff)
    return layer_normalization(x, norm_alpha, norm_bias, eps=eps)


if __name__ == "__main__":
    batch, seq, d_model, d_ff, n_layers = 2, 16, 32, 256, 2

    key = jax.random.PRNGKey(0)
    kx, ke, kp = jax.random.split(key, 3)
    x = jax.random.normal(kx, (batch, seq, d_model), jnp.float32)
    encoder_output = jax.random.normal(ke, (batch, seq, d_model), jnp.float32)
    src_msk = tgt_msk = None

    layer_params = []
    lim1 = 1.0 / math.sqrt(d_model)
    lim2 = 1.0 / math.sqrt(d_ff)
    for _ in range(n_layers):
        kp, k1, k2, k3, k4 = jax.random.split(kp, 5)
        w1 = jax.random.uniform(k1, (d_model, d_ff), jnp.float32, -lim1, lim1)
        b1 = jax.random.uniform(k2, (d_ff,), jnp.float32, -lim1, lim1)
        w2 = jax.random.uniform(k3, (d_ff, d_model), jnp.float32, -lim2, lim2)
        b2 = jax.random.uniform(k4, (d_model,), jnp.float32, -lim2, lim2)
        layer_params.append((w1, b1, w2, b2))

    alpha = jnp.ones((1,), jnp.float32)   # nn.Parameter(torch.ones(1))
    bias = jnp.zeros((1,), jnp.float32)   # nn.Parameter(torch.zeros(1))
    eps = 1e-6  # NOTE: spec passes `features` into LayerNormalization's eps
                # slot (a quirk of the source); the usual 1e-6 epsilon is used.

    # Small tiles chosen so both grid axes (rows and d_ff reduction) are
    # actually exercised at these toy shapes.
    out = decoder_forward(x, encoder_output, src_msk, tgt_msk, layer_params,
                          alpha, bias, eps=eps, ffn_tile_m=16, ffn_tk_ff=128)
    out = jax.block_until_ready(out)

    # Pure-JAX reference (same mixed precision: bf16 matmuls, f32 accumulate).
    def ref_forward(xr):
        for (w1, b1, w2, b2) in layer_params:
            h = jnp.dot(xr.astype(jnp.bfloat16), w1.astype(jnp.bfloat16),
                        preferred_element_type=jnp.float32) + b1
            h = jnp.maximum(h, 0.0)
            xr = jnp.dot(h.astype(jnp.bfloat16), w2.astype(jnp.bfloat16),
                         preferred_element_type=jnp.float32) + b2
        mean = xr.mean(-1, keepdims=True)
        std = jnp.sqrt(jnp.sum((xr - mean) ** 2, -1, keepdims=True)
                       / (d_model - 1))
        return alpha[0] * (xr - mean) / (std + eps) + bias[0]

    ref = ref_forward(x)
    assert out.shape == (batch, seq, d_model)
    assert jnp.allclose(out, ref.astype(out.dtype), atol=2e-2, rtol=2e-2), (
        float(jnp.max(jnp.abs(out - ref))))

    print("KERNEL_OK")
</pallas_src>

<mosaic_0001>
module attributes {stable_mosaic.version = 11 : i64} {
  func.func @_ffn_kernel(%arg0: i32, %arg1: i32, %arg2: memref<16x32xbf16, #tpu.memory_space<vmem>>, %arg3: memref<32x128xbf16, #tpu.memory_space<vmem>>, %arg4: memref<1x128xf32, #tpu.memory_space<vmem>>, %arg5: memref<128x32xbf16, #tpu.memory_space<vmem>>, %arg6: memref<1x32xf32, #tpu.memory_space<vmem>>, %arg7: memref<16x32xf32, #tpu.memory_space<vmem>>, %arg8: memref<16x32xf32, #tpu.memory_space<vmem>>) attributes {dimension_semantics = [#tpu.dimension_semantics<parallel>, #tpu.dimension_semantics<arbitrary>], iteration_bounds = array<i64: 2, 2>, scalar_prefetch = 0 : i64, scratch_operands = 1 : i64, tpu.core_type = #tpu.core_type<tc>, window_params = [{transform_indices = @transform_0, window_bounds = array<i64: 16, 32>}, {transform_indices = @transform_1, window_bounds = array<i64: 32, 128>}, {transform_indices = @transform_2, window_bounds = array<i64: 1, 128>}, {transform_indices = @transform_3, window_bounds = array<i64: 128, 32>}, {pipeline_mode = #tpu.pipeline_mode<synchronous>, transform_indices = @transform_4, window_bounds = array<i64: 1, 32>}, {transform_indices = @transform_5, window_bounds = array<i64: 16, 32>}]} {
    %c0_i32 = arith.constant 0 : i32
    %0 = arith.cmpi eq, %arg1, %c0_i32 : i32
    %1 = arith.extui %0 : i1 to i32
    %c0_i32_0 = arith.constant 0 : i32
    %2 = arith.cmpi ne, %1, %c0_i32_0 : i32
    scf.if %2 {
      %c0_15 = arith.constant 0 : index
      %c0_16 = arith.constant 0 : index
      %20 = vector.load %arg6[%c0_15, %c0_16] : memref<1x32xf32, #tpu.memory_space<vmem>>, vector<1x32xf32>
      %21 = vector.shape_cast %20 : vector<1x32xf32> to vector<1x32xf32>
      %22 = vector.broadcast %21 : vector<1x32xf32> to vector<16x32xf32>
      %c0_17 = arith.constant 0 : index
      %c0_18 = arith.constant 0 : index
      %23 = vector.load %arg8[%c0_17, %c0_18] : memref<16x32xf32, #tpu.memory_space<vmem>>, vector<16x32xf32>
      tpu.vector_store %arg8[%c0_17, %c0_18], %22 {strides = array<i32>} : memref<16x32xf32, #tpu.memory_space<vmem>>, vector<16x32xf32>,
    } else {
    }
    %c0 = arith.constant 0 : index
    %c0_1 = arith.constant 0 : index
    %3 = vector.load %arg2[%c0, %c0_1] : memref<16x32xbf16, #tpu.memory_space<vmem>>, vector<16x32xbf16>
    %c0_2 = arith.constant 0 : index
    %c0_3 = arith.constant 0 : index
    %4 = vector.load %arg3[%c0_2, %c0_3] : memref<32x128xbf16, #tpu.memory_space<vmem>>, vector<32x128xbf16>
    %cst = arith.constant dense<0.000000e+00> : vector<16x128xf32>
    %5 = tpu.matmul %3, %4, %cst {dimension_numbers = #tpu.dot_dimension_numbers<[1], [0], [0], [1], [0, 0, 1, 1], [], []>} : vector<16x32xbf16>, vector<32x128xbf16>, vector<16x128xf32> -> vector<16x128xf32>
    %c0_4 = arith.constant 0 : index
    %c0_5 = arith.constant 0 : index
    %6 = vector.load %arg4[%c0_4, %c0_5] : memref<1x128xf32, #tpu.memory_space<vmem>>, vector<1x128xf32>
    %7 = vector.broadcast %6 : vector<1x128xf32> to vector<16x128xf32>
    %8 = arith.addf %5, %7 : vector<16x128xf32>
    %cst_6 = arith.constant 0.000000e+00 : f32
    %9 = vector.broadcast %cst_6 : f32 to vector<16x128xf32>
    %10 = arith.maximumf %8, %9 : vector<16x128xf32>
    %c0_7 = arith.constant 0 : index
    %c0_8 = arith.constant 0 : index
    %11 = vector.load %arg8[%c0_7, %c0_8] : memref<16x32xf32, #tpu.memory_space<vmem>>, vector<16x32xf32>
    %12 = arith.truncf %10 : vector<16x128xf32> to vector<16x128xbf16>
    %c0_9 = arith.constant 0 : index
    %c0_10 = arith.constant 0 : index
    %13 = vector.load %arg5[%c0_9, %c0_10] : memref<128x32xbf16, #tpu.memory_space<vmem>>, vector<128x32xbf16>
    %cst_11 = arith.constant dense<0.000000e+00> : vector<16x32xf32>
    %14 = tpu.matmul %12, %13, %cst_11 {dimension_numbers = #tpu.dot_dimension_numbers<[1], [0], [0], [1], [0, 0, 1, 1], [], []>} : vector<16x128xbf16>, vector<128x32xbf16>, vector<16x32xf32> -> vector<16x32xf32>
    %15 = arith.addf %11, %14 : vector<16x32xf32>
    %c0_12 = arith.constant 0 : index
    %c0_13 = arith.constant 0 : index
    %16 = vector.load %arg8[%c0_12, %c0_13] : memref<16x32xf32, #tpu.memory_space<vmem>>, vector<16x32xf32>
    tpu.vector_store %arg8[%c0_12, %c0_13], %15 {strides = array<i32>} : memref<16x32xf32, #tpu.memory_space<vmem>>, vector<16x32xf32>,
    %c1_i32 = arith.constant 1 : i32
    %17 = arith.cmpi eq, %arg1, %c1_i32 : i32
    %18 = arith.extui %17 : i1 to i32
    %c0_i32_14 = arith.constant 0 : i32
    %19 = arith.cmpi ne, %18, %c0_i32_14 : i32
    scf.if %19 {
      %c0_15 = arith.constant 0 : index
      %c0_16 = arith.constant 0 : index
      %20 = vector.load %arg8[%c0_15, %c0_16] : memref<16x32xf32, #tpu.memory_space<vmem>>, vector<16x32xf32>
      %c0_17 = arith.constant 0 : index
      %c0_18 = arith.constant 0 : index
      %21 = vector.load %arg7[%c0_17, %c0_18] : memref<16x32xf32, #tpu.memory_space<vmem>>, vector<16x32xf32>
      tpu.vector_store %arg7[%c0_17, %c0_18], %20 {strides = array<i32>} : memref<16x32xf32, #tpu.memory_space<vmem>>, vector<16x32xf32>,
    } else {
    }
    return
  }
  func.func @transform_0(%arg0: i32, %arg1: i32) -> (i32, i32) {
    %c0_i32 = arith.constant 0 : i32
    %c0_i32_0 = arith.constant 0 : i32
    return %arg0, %c0_i32 : i32, i32
  }
  func.func @transform_1(%arg0: i32, %arg1: i32) -> (i32, i32) {
    %c0_i32 = arith.constant 0 : i32
    %c0_i32_0 = arith.constant 0 : i32
    return %c0_i32, %arg1 : i32, i32
  }
  func.func @transform_2(%arg0: i32, %arg1: i32) -> (i32, i32) {
    %c0_i32 = arith.constant 0 : i32
    %c0_i32_0 = arith.constant 0 : i32
    return %c0_i32, %arg1 : i32, i32
  }
  func.func @transform_3(%arg0: i32, %arg1: i32) -> (i32, i32) {
    %c0_i32 = arith.constant 0 : i32
    %c0_i32_0 = arith.constant 0 : i32
    return %arg1, %c0_i32 : i32, i32
  }
  func.func @transform_4(%arg0: i32, %arg1: i32) -> (i32, i32) {
    %c0_i32 = arith.constant 0 : i32
    %c0_i32_0 = arith.constant 0 : i32
    %c0_i32_1 = arith.constant 0 : i32
    return %c0_i32, %c0_i32_0 : i32, i32
  }
  func.func @transform_5(%arg0: i32, %arg1: i32) -> (i32, i32) {
    %c0_i32 = arith.constant 0 : i32
    %c0_i32_0 = arith.constant 0 : i32
    return %arg0, %c0_i32 : i32, i32
  }
}

</mosaic_0001>

<llo_original>
// kernel: tpu_custom_call.1
$region0: #{tpu_custom_call.1}
  #allocation0 [shape = 'u32[]', space=smem, size = 0x4, offset = 0x4, fixed_abs, tag = 'smem constant byte address 0x4 - core index']
  #allocation1 [shape = 'u32[144,128]{1,0:T(1,128)}', space=vmem, size = 0x12000, scoped, tag = 'internal scratch']
  #allocation2 [shape = 'f32[16,32]{1,0:T(8,128)}', space=vmem, size = 0x2000, scoped, tag = 'scratch operand']
  %s0 = inlined_call_operand.vmem [shape: bf16[32,32], index: 0, kind: input, shape index: {}]
  %s1 = inlined_call_operand.vmem [shape: bf16[32,256], index: 1, kind: input, shape index: {}]
  %s2 = inlined_call_operand.vmem [shape: f32[1,256], index: 2, kind: input, shape index: {}]
  %s3 = inlined_call_operand.vmem [shape: bf16[256,32], index: 3, kind: input, shape index: {}]
  %s4 = inlined_call_operand.vmem [shape: f32[1,32], index: 4, kind: input, shape index: {}]
  %s5 = inlined_call_operand.hbm [shape: f32[32,32], index: 5, kind: output, shape index: {}]
  %s6 = sld [smem:[#allocation0]]
  $region102: #{tpu_custom_call.1} parent=0
    _
  %s8 = ssub.s32 1, %s6
  %s9 = scalar_select 0, %s8, %s6
  $region1: #{tpu_custom_call.1} parent=0
    #allocation3 [shape = 'u8[16384]{0}', space=vmem, size = 0x4000, scoped, tag = 'input window, operand 1']
    #allocation4 [shape = 'u8[16384]{0}', space=vmem, size = 0x4000, scoped, tag = 'output window, operand 0']
    #allocation5 [shape = 's32[2]{0}', space=sflag, size = 0x8, scoped, tag = 'scoped memory for tpu_custom_call.1']
    %10 = vsyncpa [#allocation5], 0
    %s11 = scalar_lea.sflag [#allocation5], 1
    %12 = vsyncpa %s11, 0
    loop: start=0, step=1, limit=6
    $region2: #{tpu_custom_call.1} parent=1 // loop_pre_header
      _
    $region3: #{tpu_custom_call.1} parent=1 // loop_header
      %s14 = sphi 0, %s18
      %p15 = scmp.ge.s32.totalorder %s14, 6
      %s21 = sphi 0, %s33
      %s22 = sphi 0, %s29
      %s23 = sphi 0, %s21
      %s24 = sphi 0, %s22
      %s25 = sphi 0, %s23
      %s26 = sphi 0, %s24
      %s36 = sphi 0, %s38
      %s39 = sphi 0, %s36
      %s40 = sphi 0, %s39
      %s56 = sphi 0, %s40
      %s62 = sphi 0, %s64
      %s65 = sphi 0, %s62
      %s66 = sphi 0, %s65
      %s82 = sphi 0, %s66
      %s88 = sphi 0, %s90
      %s91 = sphi 0, %s88
      %s92 = sphi 0, %s91
      %s108 = sphi 0, %s92
      %s114 = sphi 0, %s116
      %s117 = sphi 0, %s114
      %s118 = sphi 0, %s117
      %s134 = sphi 0, %s118
      %s138 = sphi 0, %s138
      %s140 = sphi 0, %s138
      %s141 = sphi 0, %s140
      %s155 = sphi 0, %s141
      %s161 = sphi 0, %s163
      %s164 = sphi 0, %s161
      %s165 = sphi 0, %s164
      %s181 = sphi 0, %s165
    $region4: #{tpu_custom_call.1} parent=1 // loop_header_branch
      %17 = sbr.rel (%p15) target = $region8
    $region5: #{tpu_custom_call.1} parent=1 // loop_body
      %s19 = ssub.s32 %s14, 1
      %s20 = ssub.s32 %s14, 2
      %s27 = sadd.s32 1, %s22
      %p28 = scmp.ge.s32.totalorder %s27, 2
      %s29 = scalar_select %p28, 0, %s27
      %s30 = sadd.s32 1, %s21
      %s31 = scalar_select %p28, %s30, %s21
      %p32 = scmp.ge.s32.totalorder %s31, 2
      %s33 = scalar_select %p32, 0, %s31
      %s34 = ssub.s32 %s21, %s33
      %p35 = scmp.eq.s32.totalorder %s34, 0
      %s37 = sadd.s32 %s36, 1
      %s38 = scalar_select %p35, %s36, %s37
      %p41 = pneg %p35
      %p42 = scmp.eq.s32.totalorder %s14, 3
      %p43 = por %p41, %p42
      %p44 = scmp.ne.s32.totalorder %s36, %s39
      %p45 = scmp.eq.s32.totalorder %s14, 0
      %p46 = por %p44, %p45
      %p47 = scmp.ne.s32.totalorder %s36, %s39
      %p48 = scmp.eq.s32.totalorder %s19, 3
      %p49 = por %p47, %p48
      %p50 = scmp.ne.s32.totalorder %s39, %s40
      %p51 = scmp.eq.s32.totalorder %s19, 0
      %p52 = por %p50, %p51
      %p53 = scmp.ne.s32.totalorder %s39, %s40
      %p54 = scmp.eq.s32.totalorder %s20, 3
      %p55 = por %p53, %p54
      %p57 = scmp.ne.s32.totalorder %s40, %s56
      %p58 = scmp.eq.s32.totalorder %s20, 0
      %p59 = por %p57, %p58
      %s60 = ssub.s32 %s22, %s29
      %p61 = scmp.eq.s32.totalorder %s60, 0
      %s63 = sadd.s32 %s62, 1
      %s64 = scalar_select %p61, %s62, %s63
      %p67 = pneg %p61
      %p68 = scmp.eq.s32.totalorder %s14, 3
      %p69 = por %p67, %p68
      %p70 = scmp.ne.s32.totalorder %s62, %s65
      %p71 = scmp.eq.s32.totalorder %s14, 0
      %p72 = por %p70, %p71
      %p73 = scmp.ne.s32.totalorder %s62, %s65
      %p74 = scmp.eq.s32.totalorder %s19, 3
      %p75 = por %p73, %p74
      %p76 = scmp.ne.s32.totalorder %s65, %s66
      %p77 = scmp.eq.s32.totalorder %s19, 0
      %p78 = por %p76, %p77
      %p79 = scmp.ne.s32.totalorder %s65, %s66
      %p80 = scmp.eq.s32.totalorder %s20, 3
      %p81 = por %p79, %p80
      %p83 = scmp.ne.s32.totalorder %s66, %s82
      %p84 = scmp.eq.s32.totalorder %s20, 0
      %p85 = por %p83, %p84
      %s86 = ssub.s32 %s22, %s29
      %p87 = scmp.eq.s32.totalorder %s86, 0
      %s89 = sadd.s32 %s88, 1
      %s90 = scalar_select %p87, %s88, %s89
      %p93 = pneg %p87
      %p94 = scmp.eq.s32.totalorder %s14, 3
      %p95 = por %p93, %p94
      %p96 = scmp.ne.s32.totalorder %s88, %s91
      %p97 = scmp.eq.s32.totalorder %s14, 0
      %p98 = por %p96, %p97
      %p99 = scmp.ne.s32.totalorder %s88, %s91
      %p100 = scmp.eq.s32.totalorder %s19, 3
      %p101 = por %p99, %p100
      %p102 = scmp.ne.s32.totalorder %s91, %s92
      %p103 = scmp.eq.s32.totalorder %s19, 0
      %p104 = por %p102, %p103
      %p105 = scmp.ne.s32.totalorder %s91, %s92
      %p106 = scmp.eq.s32.totalorder %s20, 3
      %p107 = por %p105, %p106
      %p109 = scmp.ne.s32.totalorder %s92, %s108
      %p110 = scmp.eq.s32.totalorder %s20, 0
      %p111 = por %p109, %p110
      %s112 = ssub.s32 %s22, %s29
      %p113 = scmp.eq.s32.totalorder %s112, 0
      %s115 = sadd.s32 %s114, 1
      %s116 = scalar_select %p113, %s114, %s115
      %p119 = pneg %p113
      %p120 = scmp.eq.s32.totalorder %s14, 3
      %p121 = por %p119, %p120
      %p122 = scmp.ne.s32.totalorder %s114, %s117
      %p123 = scmp.eq.s32.totalorder %s14, 0
      %p124 = por %p122, %p123
      %p125 = scmp.ne.s32.totalorder %s114, %s117
      %p126 = scmp.eq.s32.totalorder %s19, 3
      %p127 = por %p125, %p126
      %p128 = scmp.ne.s32.totalorder %s117, %s118
      %p129 = scmp.eq.s32.totalorder %s19, 0
      %p130 = por %p128, %p129
      %p131 = scmp.ne.s32.totalorder %s117, %s118
      %p132 = scmp.eq.s32.totalorder %s20, 3
      %p133 = por %p131, %p132
      %p135 = scmp.ne.s32.totalorder %s118, %s134
      %p136 = scmp.eq.s32.totalorder %s20, 0
      %p137 = por %p135, %p136
      %s139 = sadd.s32 %s138, 1
      %p142 = scmp.eq.s32.totalorder %s14, 3
      %p143 = scmp.ne.s32.totalorder %s138, %s140
      %p144 = scmp.eq.s32.totalorder %s14, 0
      %p145 = por %p143, %p144
      %p146 = scmp.ne.s32.totalorder %s138, %s140
      %p147 = scmp.eq.s32.totalorder %s19, 3
      %p148 = por %p146, %p147
      %p149 = scmp.ne.s32.totalorder %s140, %s141
      %p150 = scmp.eq.s32.totalorder %s19, 0
      %p151 = por %p149, %p150
      %p152 = scmp.ne.s32.totalorder %s140, %s141
      %p153 = scmp.eq.s32.totalorder %s20, 3
      %p154 = por %p152, %p153
      %p156 = scmp.ne.s32.totalorder %s141, %s155
      %p157 = scmp.eq.s32.totalorder %s20, 0
      %p158 = por %p156, %p157
      %s159 = ssub.s32 %s21, %s33
      %p160 = scmp.eq.s32.totalorder %s159, 0
      %s162 = sadd.s32 %s161, 1
      %s163 = scalar_select %p160, %s161, %s162
      %p166 = pneg %p160
      %p167 = scmp.eq.s32.totalorder %s14, 3
      %p168 = por %p166, %p167
      %p169 = scmp.ne.s32.totalorder %s161, %s164
      %p170 = scmp.eq.s32.totalorder %s14, 0
      %p171 = por %p169, %p170
      %p172 = scmp.ne.s32.totalorder %s161, %s164
      %p173 = scmp.eq.s32.totalorder %s19, 3
      %p174 = por %p172, %p173
      %p175 = scmp.ne.s32.totalorder %s164, %s165
      %p176 = scmp.eq.s32.totalorder %s19, 0
      %p177 = por %p175, %p176
      %p178 = scmp.ne.s32.totalorder %s164, %s165
      %p179 = scmp.eq.s32.totalorder %s20, 3
      %p180 = por %p178, %p179
      %p182 = scmp.ne.s32.totalorder %s165, %s181
      %p183 = scmp.eq.s32.totalorder %s20, 0
      %p184 = por %p182, %p183
      %p185 = scmp.le.s32.totalorder 1, %s14
      %p186 = scmp.lt.s32.totalorder %s14, 5
      %p187 = pnand %p185, %p186
      %p188 = pneg %p187
      // Predicated region
      $region9: #{tpu_custom_call.1} parent=5 // pred_check
        _
      $region10: #{tpu_custom_call.1} parent=5 // pred_check_branch
        %190 = sbr.rel (%p187) target = $region12
      $region11: #{tpu_custom_call.1} parent=5 // pred_region
        %s191 = ssub.s32 %s14, 1
        // Predicated region
        $region13: #{tpu_custom_call.1} parent=11 // pred_check
          %p192 = pneg %p151
        $region14: #{tpu_custom_call.1} parent=11 // pred_check_branch
          %194 = sbr.rel (%p192) target = $region16
        $region15: #{tpu_custom_call.1} parent=11 // pred_region
          _
        $region16: #{tpu_custom_call.1} parent=11 // pred_fallthru
          _
      $region12: #{tpu_custom_call.1} parent=5 // pred_fallthru
        _
      %p195 = scmp.lt.s32.totalorder %s14, 4
      // Predicated region
      $region17: #{tpu_custom_call.1} parent=5 // pred_check
        %p196 = pneg %p195
      $region18: #{tpu_custom_call.1} parent=5 // pred_check_branch
        %198 = sbr.rel (%p196) target = $region20
      $region19: #{tpu_custom_call.1} parent=5 // pred_region
        // Predicated region
        $region21: #{tpu_custom_call.1} parent=19 // pred_check
          %p199 = pneg %p46
        $region22: #{tpu_custom_call.1} parent=19 // pred_check_branch
          %201 = sbr.rel (%p199) target = $region24
        $region23: #{tpu_custom_call.1} parent=19 // pred_region
          %s202 = smul.u32 2, %s21
          %p203 = scmp.lt.s32.totalorder %s202, 3
          %s204 = scalar_select %p203, %s202, 3
          %s205 = smul.addr %s204, 4
          %s206 = scalar_lea.vmem %s0, %s205
          %s207 = smul.u32 2, %s21
        $region24: #{tpu_custom_call.1} parent=19 // pred_fallthru
          _
        // Predicated region
        $region25: #{tpu_custom_call.1} parent=19 // pred_check
          %p208 = pneg %p72
        $region26: #{tpu_custom_call.1} parent=19 // pred_check_branch
          %210 = sbr.rel (%p208) target = $region28
        $region27: #{tpu_custom_call.1} parent=19 // pred_region
          %s211 = sand.u32 %s62, 1
          %s212 = sand.u32 %s62, 1
          %s213 = smul.addr %s212, 16
          %s214 = scalar_lea.vmem [#allocation3], %s213
          %s215 = smul.addr %s22, 4
          %s216 = scalar_lea.vmem %s1, %s215
          // Predicated region
          $region29: #{tpu_custom_call.1} parent=27 // pred_check
            _
          $region30: #{tpu_custom_call.1} parent=27 // pred_check_branch
            %218 = sbr.rel (0) target = $region32
          $region31: #{tpu_custom_call.1} parent=27 // pred_region
            // Predicated region
            $region33: #{tpu_custom_call.1} parent=31 // pred_check
              _
            $region34: #{tpu_custom_call.1} parent=31 // pred_check_branch
              %220 = sbr.rel target = $region36
            $region35: #{tpu_custom_call.1} parent=31 // pred_region
              // Predicated region
              $region48: #{tpu_custom_call.1} parent=35 // pred_check
                _
              $region49: #{tpu_custom_call.1} parent=35 // pred_check_branch
                %242 = sbr.rel (0) target = $region51
              $region50: #{tpu_custom_call.1} parent=35 // pred_region
                loop: start=0, step=1, limit=1
                $region52: #{tpu_custom_call.1} parent=50 // loop_pre_header
                  _
                $region53: #{tpu_custom_call.1} parent=50 // loop_header
                  %s244 = sphi 0, %s248
                  %p245 = scmp.ge.s32.totalorder %s244, 1
                  %s249 = sphi %s216, %s216
                  %s250 = sphi %s214, %s214
                $region54: #{tpu_custom_call.1} parent=50 // loop_header_branch
                  %247 = sbr.rel (%p245) target = $region58
                $region55: #{tpu_custom_call.1} parent=50 // loop_body
                  _
                $region56: #{tpu_custom_call.1} parent=50 // loop_footer
                  %s248 = sadd.s32 1, %s244
                $region57: #{tpu_custom_call.1} parent=50 // loop_footer_branch
                  %243 = sbr.rel target = $region53
                $region58: #{tpu_custom_call.1} parent=50 // loop_exit
                  _
                %s252 = ssub.s32 16, 1
                loop: start=0, step=1, limit=1
                $region59: #{tpu_custom_call.1} parent=50 // loop_pre_header
                  _
                $region60: #{tpu_custom_call.1} parent=50 // loop_header
                  %s254 = sphi 0, %s258
                  %p255 = scmp.ge.s32.totalorder %s254, 1
                  %s259 = sphi %s216, %s216
                  %s260 = sphi %s214, %s214
                $region61: #{tpu_custom_call.1} parent=50 // loop_header_branch
                  %257 = sbr.rel (%p255) target = $region65
                $region62: #{tpu_custom_call.1} parent=50 // loop_body
                  %v261 = vld [vmem:[%s259] sm:%s252]
                  %262 = vst [vmem:[%s260] sm:%s252] %v261
                  %v263 = vld [vmem:[%s259 + $0x8] sm:%s252]
                  %264 = vst [vmem:[%s260 + $0x4] sm:%s252] %v263
                  %v265 = vld [vmem:[%s259 + $0x10] sm:%s252]
                  %266 = vst [vmem:[%s260 + $0x8] sm:%s252] %v265
                  %v267 = vld [vmem:[%s259 + $0x18] sm:%s252]
                  %268 = vst [vmem:[%s260 + $0xc] sm:%s252] %v267
                $region63: #{tpu_custom_call.1} parent=50 // loop_footer
                  %s258 = sadd.s32 1, %s254
                $region64: #{tpu_custom_call.1} parent=50 // loop_footer_branch
                  %253 = sbr.rel target = $region60
                $region65: #{tpu_custom_call.1} parent=50 // loop_exit
                  _
              $region51: #{tpu_custom_call.1} parent=35 // pred_fallthru
                _
            $region36: #{tpu_custom_call.1} parent=31 // pred_fallthru
              _
            // Predicated region
            $region37: #{tpu_custom_call.1} parent=31 // pred_check
              _
            $region38: #{tpu_custom_call.1} parent=31 // pred_check_branch
              %222 = sbr.rel (0) target = $region40
            $region39: #{tpu_custom_call.1} parent=31 // pred_region
              %s224 = ssub.s32 16, 1
              loop: start=0, step=1, limit=1
              $region41: #{tpu_custom_call.1} parent=39 // loop_pre_header
                _
              $region42: #{tpu_custom_call.1} parent=39 // loop_header
                %s226 = sphi 0, %s230
                %p227 = scmp.ge.s32.totalorder %s226, 1
                %s231 = sphi %s216, %s216
                %s232 = sphi %s214, %s214
              $region43: #{tpu_custom_call.1} parent=39 // loop_header_branch
                %229 = sbr.rel (%p227) target = $region47
              $region44: #{tpu_custom_call.1} parent=39 // loop_body
                %v233 = vld [vmem:[%s231] sm:%s224]
                %234 = vst [vmem:[%s232] sm:%s224] %v233
                %v235 = vld [vmem:[%s231 + $0x8] sm:%s224]
                %236 = vst [vmem:[%s232 + $0x4] sm:%s224] %v235
                %v237 = vld [vmem:[%s231 + $0x10] sm:%s224]
                %238 = vst [vmem:[%s232 + $0x8] sm:%s224] %v237
                %v239 = vld [vmem:[%s231 + $0x18] sm:%s224]
                %240 = vst [vmem:[%s232 + $0xc] sm:%s224] %v239
              $region45: #{tpu_custom_call.1} parent=39 // loop_footer
                %s230 = sadd.s32 1, %s226
              $region46: #{tpu_custom_call.1} parent=39 // loop_footer_branch
                %225 = sbr.rel target = $region42
              $region47: #{tpu_custom_call.1} parent=39 // loop_exit
                _
            $region40: #{tpu_custom_call.1} parent=31 // pred_fallthru
              _
          $region32: #{tpu_custom_call.1} parent=27 // pred_fallthru
            _
          %269 = vnop
        $region28: #{tpu_custom_call.1} parent=19 // pred_fallthru
          _
        // Predicated region
        $region66: #{tpu_custom_call.1} parent=19 // pred_check
          %p270 = pneg %p98
        $region67: #{tpu_custom_call.1} parent=19 // pred_check_branch
          %272 = sbr.rel (%p270) target = $region69
        $region68: #{tpu_custom_call.1} parent=19 // pred_region
          %p273 = scmp.lt.s32.totalorder %s22, 1
          %s274 = scalar_select %p273, %s22, 1
          %s275 = scalar_lea.vmem %s2, %s274
        $region69: #{tpu_custom_call.1} parent=19 // pred_fallthru
          _
        // Predicated region
        $region70: #{tpu_custom_call.1} parent=19 // pred_check
          %p276 = pneg %p124
        $region71: #{tpu_custom_call.1} parent=19 // pred_check_branch
          %278 = sbr.rel (%p276) target = $region73
        $region72: #{tpu_custom_call.1} parent=19 // pred_region
          %s279 = smul.u32 16, %s22
          %p280 = scmp.lt.s32.totalorder %s279, 31
          %s281 = scalar_select %p280, %s279, 31
          %s282 = smul.addr %s281, 4
          %s283 = scalar_lea.vmem %s3, %s282
          %s284 = smul.u32 16, %s22
        $region73: #{tpu_custom_call.1} parent=19 // pred_fallthru
          _
      $region20: #{tpu_custom_call.1} parent=5 // pred_fallthru
        _
      %p285 = scmp.le.s32.totalorder 1, %s14
      %p286 = scmp.lt.s32.totalorder %s14, 5
      %p287 = pnand %p285, %p286
      %p288 = pneg %p287
      // Predicated region
      $region74: #{tpu_custom_call.1} parent=5 // pred_check
        _
      $region75: #{tpu_custom_call.1} parent=5 // pred_check_branch
        %290 = sbr.rel (%p287) target = $region77
      $region76: #{tpu_custom_call.1} parent=5 // pred_region
        %s291 = ssub.s32 %s14, 1
        %s292 = sand.u32 %s65, 1
        %s293 = sand.u32 %s65, 1
        %s294 = smul.addr %s293, 16
        %s295 = scalar_lea.vmem [#allocation3], %s294
        // Predicated region
        $region78: #{tpu_custom_call.1} parent=76 // pred_check
          %p296 = pneg %p78
        $region79: #{tpu_custom_call.1} parent=76 // pred_check_branch
          %298 = sbr.rel (%p296) target = $region81
        $region80: #{tpu_custom_call.1} parent=76 // pred_region
          _
        $region81: #{tpu_custom_call.1} parent=76 // pred_fallthru
          _
        %s299 = smul.u32 2, %s23
        %p300 = scmp.lt.s32.totalorder %s299, 3
        %s301 = scalar_select %p300, %s299, 3
        %s302 = smul.addr %s301, 4
        %s303 = scalar_lea.vmem %s0, %s302
        %p304 = pneg %p52
        %p305 = pneg %p49
        %s306 = sand.u32 %s65, 1
        %s307 = sand.u32 %s65, 1
        %s308 = smul.addr %s307, 16
        %s309 = scalar_lea.vmem [#allocation3], %s308
        %p310 = pneg %p78
        %p311 = pneg %p75
        %p312 = scmp.lt.s32.totalorder %s24, 1
        %s313 = scalar_select %p312, %s24, 1
        %s314 = scalar_lea.vmem %s2, %s313
        %p315 = pneg %p104
        %p316 = pneg %p101
        %s317 = smul.u32 16, %s24
        %p318 = scmp.lt.s32.totalorder %s317, 31
        %s319 = scalar_select %p318, %s317, 31
        %s320 = smul.addr %s319, 4
        %s321 = scalar_lea.vmem %s3, %s320
        %p322 = pneg %p130
        %p323 = pneg %p127
        %p324 = pneg %p151
        %p325 = pneg %p148
        %p326 = pneg %p177
        %p327 = pneg %p174
        %s328 = sand.u32 %s164, 1
        %s329 = scalar_lea.sflag [#allocation5], %s328
        %s330 = sand.u32 %s164, 1
        %s331 = smul.addr %s330, 16
        %s332 = scalar_lea.vmem [#allocation4], %s331
        %s333 = smul.u32 2, %s23
        %p334 = scmp.lt.s32.totalorder %s333, 3
        %s335 = scalar_select %p334, %s333, 3
        %s336 = smul.addr %s335, 4
        %s337 = scalar_lea.vmem %s0, %s336
        %s338 = smul.u32 2, %s23
        %p339 = scmp.lt.s32.totalorder %s24, 1
        %s340 = scalar_select %p339, %s24, 1
        %s341 = scalar_lea.vmem %s2, %s340
        %s342 = smul.u32 16, %s24
        %p343 = scmp.lt.s32.totalorder %s342, 31
        %s344 = scalar_select %p343, %s342, 31
        %s345 = smul.addr %s344, 4
        %s346 = scalar_lea.vmem %s3, %s345
        %s347 = smul.u32 16, %s24
        %s348 = smul.u32 2, %s23
        %p350 = scmp.eq.s32.totalorder %s24, 0
        // Predicated region
        $region82: #{tpu_custom_call.1} parent=76 // pred_check
          %p351 = pneg %p350
        $region83: #{tpu_custom_call.1} parent=76 // pred_check_branch
          %353 = sbr.rel (%p351) target = $region85
        $region84: #{tpu_custom_call.1} parent=76 // pred_region
          %v354 = vld [vmem:[%s4] sm:$0x1]
          %v356 = vlaneseq
          %v357 = vshrl.u32 %v356, 7
          %v358 = vsub.s32 0, %v357
          %v359 = vrot.slane %v354, %v358
          %vm361 = vcmask 261120
          %362 = vst.msk [vmem:[#allocation2] sm:$0xff] %vm361, %v359
          %363 = vst.msk [vmem:[#allocation2 + $0x8] sm:$0xff] %vm361, %v359
        $region85: #{tpu_custom_call.1} parent=76 // pred_fallthru
          _
        %v364 = vld [vmem:[%s337] sm:$0xf]
        %v365 = vld [vmem:[%s337 + $0x4] sm:$0xf]
        %v366 = vld [vmem:[%s295] sm:$0xf]
        %v367 = vld [vmem:[%s295 + $0x4] sm:$0xf]
        %v368 = vld [vmem:[%s295 + $0x8] sm:$0xf]
        %v369 = vld [vmem:[%s295 + $0xc] sm:$0xf]
        %v370 = vld [vmem:[%s341] sm:$0x1]
        %v372 = vlaneseq
        %v373 = vshrl.u32 %v372, 7
        %v374 = vsub.s32 0, %v373
        %v375 = vrot.slane %v370, %v374
        %v379 = vunpack.c.l.b16 %v364
        %v380 = vunpack.c.l.b16 %v365
        %v381 = vpack.c.b16 %v380, %v379
        %v386 = vunpack.c.l.b16 %v366
        %v387 = vunpack.c.l.b16 %v367
        %v388 = vunpack.c.l.b16 %v368
        %v389 = vunpack.c.l.b16 %v369
        %v390 = vpack.c.b16 %v387, %v386
        %v391 = vpack.c.b16 %v389, %v388
        %vm394 = vcmask 261120
        %v396 = vsel %vm394, %v381, 0
        %398 = vmatprep.subr.bf16.mxu0 0
        %399 = vmatpush1.bf16.msra.mxu0 0
        %400 = vmatprep.subr.bf16.mxu0 0
        %401 = vmatpush1.bf16.msra.mxu0 0
        %402 = vmatprep.subr.bf16.mxu0 0
        %403 = vmatpush1.bf16.msra.mxu0 0
        %404 = vmatprep.subr.bf16.mxu0 0
        %405 = vmatpush1.bf16.msra.mxu0 0
        %406 = vmatprep.subr.bf16.mxu0 0
        %407 = vmatpush1.bf16.msra.mxu0 0
        %408 = vmatprep.subr.bf16.mxu0 0
        %409 = vmatpush1.bf16.msra.mxu0 0
        %410 = vmatprep.subr.bf16.mxu0 0
        %411 = vmatpush1.bf16.msra.mxu0 %v391
        %412 = vmatprep.subr.bf16.mxu0 0
        %413 = vmatpush1.bf16.msra.mxu0 %v390
        %414 = vmatprep.subr.bf16.mxu0 0
        %415 = vmatpush2.bf16.msra.mxu0 0
        %416 = vmatprep.subr.bf16.mxu0 0
        %417 = vmatpush2.bf16.msra.mxu0 0
        %418 = vmatprep.subr.bf16.mxu0 0
        %419 = vmatpush2.bf16.msra.mxu0 0
        %420 = vmatprep.subr.bf16.mxu0 0
        %421 = vmatpush2.bf16.msra.mxu0 0
        %422 = vmatprep.subr.bf16.mxu0 0
        %423 = vmatpush2.bf16.msra.mxu0 0
        %424 = vmatprep.subr.bf16.mxu0 0
        %425 = vmatpush2.bf16.msra.mxu0 0
        %426 = vmatprep.subr.bf16.mxu0 0
        %427 = vmatpush2.bf16.msra.mxu0 0
        %428 = vmatprep.subr.bf16.mxu0 0
        %429 = vmatpush2.bf16.msra.mxu0 0
        %430 = vmatprep.mubr.bf16.mxu0 0
        %431 = vmatmul.mubr.bf16.gmra.mxu0 %v396
        %v432 = vpop.f32.mrf.mxu0
        %v433 = vadd.f32 %v375, %v432
        %v434 = vpop.f32.mrf.mxu0
        %v435 = vpop.f32.mrf.mxu0
        %v436 = vadd.f32 %v375, %v435
        %v437 = vpop.f32.mrf.mxu0
        %438 = vdwg.mxu0
        %v439 = vmax.f32 %v433, 0.0
        %v440 = vmax.f32 %v436, 0.0
        %v441 = vld [vmem:[#allocation2] sm:$0xff]
        %v442 = vld [vmem:[#allocation2 + $0x8] sm:$0xff]
        %v443 = vpack.c.bf16 %v440, %v439
        %v444 = vld [vmem:[%s346] sm:$0xf]
        %v445 = vld [vmem:[%s346 + $0x4] sm:$0xf]
        %v446 = vld [vmem:[%s346 + $0x8] sm:$0xf]
        %v447 = vld [vmem:[%s346 + $0xc] sm:$0xf]
        %v448 = vld [vmem:[%s346 + $0x10] sm:$0xf]
        %v449 = vld [vmem:[%s346 + $0x14] sm:$0xf]
        %v450 = vld [vmem:[%s346 + $0x18] sm:$0xf]
        %v451 = vld [vmem:[%s346 + $0x1c] sm:$0xf]
        %v452 = vld [vmem:[%s346 + $0x20] sm:$0xf]
        %v453 = vld [vmem:[%s346 + $0x24] sm:$0xf]
        %v454 = vld [vmem:[%s346 + $0x28] sm:$0xf]
        %v455 = vld [vmem:[%s346 + $0x2c] sm:$0xf]
        %v456 = vld [vmem:[%s346 + $0x30] sm:$0xf]
        %v457 = vld [vmem:[%s346 + $0x34] sm:$0xf]
        %v458 = vld [vmem:[%s346 + $0x38] sm:$0xf]
        %v459 = vld [vmem:[%s346 + $0x3c] sm:$0xf]
        %v476 = vunpack.c.l.b16 %v444
        %v477 = vunpack.c.l.b16 %v445
        %v478 = vunpack.c.l.b16 %v446
        %v479 = vunpack.c.l.b16 %v447
        %v480 = vunpack.c.l.b16 %v448
        %v481 = vunpack.c.l.b16 %v449
        %v482 = vunpack.c.l.b16 %v450
        %v483 = vunpack.c.l.b16 %v451
        %v484 = vunpack.c.l.b16 %v452
        %v485 = vunpack.c.l.b16 %v453
        %v486 = vunpack.c.l.b16 %v454
        %v487 = vunpack.c.l.b16 %v455
        %v488 = vunpack.c.l.b16 %v456
        %v489 = vunpack.c.l.b16 %v457
        %v490 = vunpack.c.l.b16 %v458
        %v491 = vunpack.c.l.b16 %v459
        %v492 = vpack.c.b16 %v477, %v476
        %v493 = vpack.c.b16 %v479, %v478
        %v494 = vpack.c.b16 %v481, %v480
        %v495 = vpack.c.b16 %v483, %v482
        %v496 = vpack.c.b16 %v485, %v484
        %v497 = vpack.c.b16 %v487, %v486
        %v498 = vpack.c.b16 %v489, %v488
        %v499 = vpack.c.b16 %v491, %v490
        %508 = vmatprep.subr.bf16.mxu0 0
        %509 = vmatpush1.bf16.msra.mxu0 %v499
        %510 = vmatprep.subr.bf16.mxu0 0
        %511 = vmatpush1.bf16.msra.mxu0 %v498
        %512 = vmatprep.subr.bf16.mxu0 0
        %513 = vmatpush1.bf16.msra.mxu0 %v497
        %514 = vmatprep.subr.bf16.mxu0 0
        %515 = vmatpush1.bf16.msra.mxu0 %v496
        %516 = vmatprep.subr.bf16.mxu0 0
        %517 = vmatpush1.bf16.msra.mxu0 %v495
        %518 = vmatprep.subr.bf16.mxu0 0
        %519 = vmatpush1.bf16.msra.mxu0 %v494
        %520 = vmatprep.subr.bf16.mxu0 0
        %521 = vmatpush1.bf16.msra.mxu0 %v493
        %522 = vmatprep.subr.bf16.mxu0 0
        %523 = vmatpush1.bf16.msra.mxu0 %v492
        %524 = vmatprep.subr.bf16.mxu0 0
        %525 = vmatpush2.bf16.msra.mxu0 0
        %526 = vmatprep.subr.bf16.mxu0 0
        %527 = vmatpush2.bf16.msra.mxu0 0
        %528 = vmatprep.subr.bf16.mxu0 0
        %529 = vmatpush2.bf16.msra.mxu0 0
        %530 = vmatprep.subr.bf16.mxu0 0
        %531 = vmatpush2.bf16.msra.mxu0 0
        %532 = vmatprep.subr.bf16.mxu0 0
        %533 = vmatpush2.bf16.msra.mxu0 0
        %534 = vmatprep.subr.bf16.mxu0 0
        %535 = vmatpush2.bf16.msra.mxu0 0
        %536 = vmatprep.subr.bf16.mxu0 0
        %537 = vmatpush2.bf16.msra.mxu0 0
        %538 = vmatprep.subr.bf16.mxu0 0
        %539 = vmatpush2.bf16.msra.mxu0 0
        %540 = vmatprep.mubr.bf16.mxu0 0
        %541 = vmatmul.mubr.bf16.gmra.mxu0 %v443
        %v542 = vpop.f32.mrf.mxu0
        %v543 = vadd.f32 0.0, %v542
        %v544 = vpop.f32.mrf.mxu0
        %v545 = vpop.f32.mrf.mxu0
        %v546 = vadd.f32 0.0, %v545
        %v547 = vpop.f32.mrf.mxu0
        %548 = vdwg.mxu0
        %v549 = vadd.f32 %v441, %v543
        %v550 = vadd.f32 %v442, %v546
        %551 = vst.msk [vmem:[#allocation2] sm:$0xff] %vm394, %v549
        %552 = vst.msk [vmem:[#allocation2 + $0x8] sm:$0xff] %vm394, %v550
        %p553 = scmp.eq.s32.totalorder %s24, 1
        // Predicated region
        $region86: #{tpu_custom_call.1} parent=76 // pred_check
          %p554 = pneg %p553
        $region87: #{tpu_custom_call.1} parent=76 // pred_check_branch
          %556 = sbr.rel (%p554) target = $region89
        $region88: #{tpu_custom_call.1} parent=76 // pred_region
          %v557 = vld [vmem:[#allocation2] sm:$0xff]
          %v558 = vld [vmem:[#allocation2 + $0x8] sm:$0xff]
          %559 = vst.msk [vmem:[%s332] sm:$0xff] %vm394, %v557
          %560 = vst.msk [vmem:[%s332 + $0x8] sm:$0xff] %vm394, %v558
        $region89: #{tpu_custom_call.1} parent=76 // pred_fallthru
          _
        %s561 = sand.u32 %s164, 1
        %s562 = scalar_lea.sflag [#allocation5], %s561
        %s563 = sand.u32 %s164, 1
        %s564 = smul.addr %s563, 16
        %s565 = scalar_lea.vmem [#allocation4], %s564
        // Predicated region
        $region90: #{tpu_custom_call.1} parent=76 // pred_check
          %p566 = pneg %p174
        $region91: #{tpu_custom_call.1} parent=76 // pred_check_branch
          %568 = sbr.rel (%p566) target = $region93
        $region92: #{tpu_custom_call.1} parent=76 // pred_region
          %s569 = smul.u32 2, %s23
          %s571 = ssub.s32 256, 256
          %572 = vsyncadd %s562, %s571
          %s573 = smul.addr %s569, 128
          %s574 = scalar_lea.hbm %s5, %s573
          %s575 = sshll.u32 %s565, 4
          %s576 = int_to_ptr.vmem [resolvable:$true] %s575
          %581 = dma.vmem_to_hbm [thread:$0]  %s576, 256, %s574, %s562, 128, 128, 8
        $region93: #{tpu_custom_call.1} parent=76 // pred_fallthru
          _
      $region77: #{tpu_custom_call.1} parent=5 // pred_fallthru
        _
      %p582 = scmp.le.s32.totalorder 2, %s14
      // Predicated region
      $region94: #{tpu_custom_call.1} parent=5 // pred_check
        %p583 = pneg %p582
      $region95: #{tpu_custom_call.1} parent=5 // pred_check_branch
        %585 = sbr.rel (%p583) target = $region97
      $region96: #{tpu_custom_call.1} parent=5 // pred_region
        %s586 = ssub.s32 %s14, 2
        // Predicated region
        $region98: #{tpu_custom_call.1} parent=96 // pred_check
          %p587 = pneg %p180
        $region99: #{tpu_custom_call.1} parent=96 // pred_check_branch
          %589 = sbr.rel (%p587) target = $region101
        $region100: #{tpu_custom_call.1} parent=96 // pred_region
          %s590 = sand.u32 %s165, 1
          %s591 = scalar_lea.sflag [#allocation5], %s590
          %s592 = sand.u32 %s165, 1
          %s593 = smul.addr %s592, 16
          %s594 = scalar_lea.vmem [#allocation4], %s593
          %595 = dma.done %s591, 256
        $region101: #{tpu_custom_call.1} parent=96 // pred_fallthru
          _
      $region97: #{tpu_custom_call.1} parent=5 // pred_fallthru
        _
    $region6: #{tpu_custom_call.1} parent=1 // loop_footer
      %s18 = sadd.s32 1, %s14
    $region7: #{tpu_custom_call.1} parent=1 // loop_footer_branch
      %13 = sbr.rel target = $region3
    $region8: #{tpu_custom_call.1} parent=1 // loop_exit
      _
    %596 = vsyncpa [#allocation5], 1
    %s597 = scalar_lea.sflag [#allocation5], 1
    %598 = vsyncpa %s597, 1

</llo_original>
